<compile_context>
chip_gen: v7x
topology: tpu7x:2x2x1
jax: 0.10.0
libtpu: 0.0.40
codegen_flags: <defaults>
</compile_context>

<pallas_src>
import jax
import jax.numpy as jnp
from jax.experimental import pallas as pl
from jax.experimental.pallas import tpu as pltpu


def _round_up(n, m):
    return (n + m - 1) // m * m


# ----------------------------------------------------------------------------
# Fused Encoder kernel: the full layer stack is unrolled inside one body.
# ----------------------------------------------------------------------------
def make_encoder_kernel(hidden_dims, compute_dtype):
    num_layers = len(hidden_dims)

    def kernel(x_ref, *refs):
        out_ref = refs[-1]
        w_refs = refs[:-1]

        x = x_ref[...]                                   # (TILE_B, in_dim) f32
        for li in range(num_layers):                     # static unroll
            base = 5 * li
            wcat = w_refs[base + 0][...]                 # (in, hid+out) compute_dtype
            bcat = w_refs[base + 1][...]                 # (1,  hid+out) f32 (b1 | bs+b2)
            w2 = w_refs[base + 2][...]                   # (hid, out)    compute_dtype
            gamma = w_refs[base + 3][...]                # (1,   out)
            beta = w_refs[base + 4][...]                 # (1,   out)
            hid = hidden_dims[li]

            # Single wide matmul covering both the hidden and skip paths.
            xs = jnp.dot(x.astype(compute_dtype), wcat,
                         preferred_element_type=jnp.float32) + bcat
            h = jnp.maximum(xs[:, :hid], 0.0)            # ReLU(Linear_1(x))
            skip = xs[:, hid:]                           # Linear_skip(x) + b2 folded in

            # Main path (dropout -> identity at inference); b2 already in skip.
            z = jnp.dot(h.astype(compute_dtype), w2,
                        preferred_element_type=jnp.float32) + skip

            # LayerNorm over the last dim (eps matches nn.LayerNorm 1e-5).
            mean = jnp.mean(z, axis=-1, keepdims=True)
            zc = z - mean
            var = jnp.mean(zc * zc, axis=-1, keepdims=True)
            x = zc * (jax.lax.rsqrt(var + 1e-5) * gamma) + beta

        out_ref[...] = x.astype(out_ref.dtype)

    return kernel


# ----------------------------------------------------------------------------
# Wrapper: batch-tiled grid, VMEM-resident weights, cost estimate.
# ----------------------------------------------------------------------------
_VMEM_LIMIT = 64 * 1024 * 1024


def _choose_tile_b(batch, in_dim, out_dim, layer_dims, tile_b, vmem_limit):
    """Largest 8-aligned batch tile s.t. weights + activations fit comfortably."""
    weight_bytes = sum(
        4 * (i * (h + o) + (h + o) + h * o + 2 * o) for i, h, o in layer_dims)
    widest = max(max(i, h + o, o) for i, h, o in layer_dims)
    tb = min(_round_up(tile_b, 8), _round_up(batch, 8))

    def act_bytes(t):
        # x/out tiles double-buffered by the pipeline + ~3 live intermediates.
        return 4 * t * (2 * (in_dim + out_dim) + 3 * widest)

    while tb > 8 and weight_bytes + act_bytes(tb) > vmem_limit // 2:
        tb = _round_up(tb // 2, 8)
    return tb


def encoder_forward(x, fused_params, hidden_dims, *, tile_b=256,
                    compute_dtype=jnp.float32):
    batch, in_dim = x.shape
    num_layers = len(fused_params)
    out_dim = fused_params[-1]["w2"].shape[1]

    layer_dims = []
    for li, p in enumerate(fused_params):
        in_l = p["wcat"].shape[0]
        hid_l = hidden_dims[li]
        out_l = p["w2"].shape[1]
        layer_dims.append((in_l, hid_l, out_l))

    # Batch tile: 8-aligned (sublane), sized to fit VMEM; pad ragged batch.
    tb = _choose_tile_b(batch, in_dim, out_dim, layer_dims, tile_b, _VMEM_LIMIT)
    padded = _round_up(batch, tb)
    if padded != batch:
        x = jnp.pad(x, ((0, padded - batch), (0, 0)))
    grid = (padded // tb,)

    # Flat operand list + specs: x is tiled over batch, weights are
    # whole-array blocks with a constant index map (stay resident in VMEM).
    operands = [x]
    in_specs = [pl.BlockSpec((tb, in_dim), lambda i: (i, 0))]
    for p in fused_params:
        for name in ("wcat", "bcat", "w2", "gamma", "beta"):
            arr = p[name]
            operands.append(arr)
            in_specs.append(pl.BlockSpec(arr.shape, lambda i: (0, 0)))
    out_specs = pl.BlockSpec((tb, out_dim), lambda i: (i, 0))

    # Advisory cost estimate for XLA scheduling around the custom call.
    flops = 0
    weight_bytes = 0
    for (in_l, hid_l, out_l), p in zip(layer_dims, fused_params):
        flops += 2 * padded * in_l * (hid_l + out_l) + 2 * padded * hid_l * out_l
        flops += 8 * padded * out_l  # relu / add / layernorm epilogue
        weight_bytes += sum(
            int(p[n].size) * p[n].dtype.itemsize
            for n in ("wcat", "bcat", "w2", "gamma", "beta"))
    bytes_accessed = (int(x.size) * x.dtype.itemsize
                      + padded * out_dim * 4 + weight_bytes)
    cost = pl.CostEstimate(flops=int(flops),
                           transcendentals=int(padded * num_layers),
                           bytes_accessed=int(bytes_accessed))

    out = pl.pallas_call(
        make_encoder_kernel(tuple(hidden_dims), compute_dtype),
        out_shape=jax.ShapeDtypeStruct((padded, out_dim), jnp.float32),
        grid=grid,
        in_specs=in_specs,
        out_specs=out_specs,
        compiler_params=pltpu.CompilerParams(
            dimension_semantics=("parallel",),
            vmem_limit_bytes=_VMEM_LIMIT),
        cost_estimate=cost,
    )(*operands)
    return out[:batch]


# ----------------------------------------------------------------------------
# Deterministic parameter init (shapes follow ResidualBlock.__init__) and
# fusion of W1|Wskip into one wide weight (+ b2 folded into the skip bias).
# ----------------------------------------------------------------------------
def init_residual_block(key, in_dim, hid_dim, out_dim):
    k1, k2, k3, k4, k5, k6 = jax.random.split(key, 6)
    s1 = 1.0 / jnp.sqrt(jnp.float32(in_dim))
    s2 = 1.0 / jnp.sqrt(jnp.float32(hid_dim))
    return {
        "w1": jax.random.uniform(k1, (in_dim, hid_dim), jnp.float32, -s1, s1),
        "b1": jax.random.uniform(k2, (1, hid_dim), jnp.float32, -s1, s1),
        "w2": jax.random.uniform(k3, (hid_dim, out_dim), jnp.float32, -s2, s2),
        "b2": jax.random.uniform(k4, (1, out_dim), jnp.float32, -s2, s2),
        "ws": jax.random.uniform(k5, (in_dim, out_dim), jnp.float32, -s1, s1),
        "bs": jax.random.uniform(k6, (1, out_dim), jnp.float32, -s1, s1),
        "gamma": jnp.ones((1, out_dim), jnp.float32),
        "beta": jnp.zeros((1, out_dim), jnp.float32),
    }


def init_encoder(key, input_dims, hidden_dims, output_dims, num_layers):
    keys = jax.random.split(key, num_layers)
    return [
        init_residual_block(keys[i], input_dims[i], hidden_dims[i], output_dims[i])
        for i in range(num_layers)
    ]


def fuse_block_params(p, compute_dtype=jnp.float32):
    """W_cat = [W1 | Wskip]; b_cat = [b1 | bs + b2] (b2 folded into skip bias).

    Matmul weights are pre-cast to compute_dtype once here (f32 accumulation
    and f32 epilogue are kept inside the kernel).
    """
    wcat = jnp.concatenate([p["w1"], p["ws"]], axis=1)
    bcat = jnp.concatenate([p["b1"], p["bs"] + p["b2"]], axis=1)
    return {
        "wcat": wcat.astype(compute_dtype),
        "bcat": bcat,                                  # stays f32
        "w2": p["w2"].astype(compute_dtype),
        "gamma": p["gamma"],
        "beta": p["beta"],
    }


# ----------------------------------------------------------------------------
# Pure-JAX reference for correctness check (un-fused weights).
# ----------------------------------------------------------------------------
def residual_block_ref(x, p):
    h = jnp.maximum(x @ p["w1"] + p["b1"], 0.0)
    y = h @ p["w2"] + p["b2"]
    skip = x @ p["ws"] + p["bs"]
    z = y + skip
    mean = jnp.mean(z, axis=-1, keepdims=True)
    var = jnp.mean((z - mean) ** 2, axis=-1, keepdims=True)
    return (z - mean) / jnp.sqrt(var + 1e-5) * p["gamma"] + p["beta"]


def encoder_ref(x, layer_params):
    for p in layer_params:
        x = residual_block_ref(x, p)
    return x


if __name__ == "__main__":
    # Encoder config: num_layers=2; per-layer (input, hidden, output) dims.
    input_dims = [16, 32]
    hidden_dims = [32, 32]
    output_dims = [32, 24]
    num_layers = 2
    batch = 8
    # TODO(synk): dropout=0.1 in __init__ is training-only; inference forward
    # treats Dropout as identity (no PRNG dropout implemented in-kernel).

    key = jax.random.PRNGKey(0)
    kx, kp = jax.random.split(key)
    x = jax.random.normal(kx, (batch, input_dims[0]), jnp.float32)
    raw_params = init_encoder(kp, input_dims, hidden_dims, output_dims, num_layers)
    # For production TiDE dims on v6e/v7x, pass compute_dtype=jnp.bfloat16 to
    # both fuse_block_params and encoder_forward (f32 accumulate + epilogue).
    fused_params = [fuse_block_params(p, jnp.float32) for p in raw_params]

    out = jax.block_until_ready(
        encoder_forward(x, fused_params, hidden_dims, compute_dtype=jnp.float32))
    ref = encoder_ref(x, raw_params)

    assert out.shape == (batch, output_dims[-1])
    assert jnp.allclose(out, ref, atol=1e-4, rtol=1e-4), "mismatch vs JAX reference"
    print("KERNEL_OK")
</pallas_src>

<mosaic_0001>
module attributes {stable_mosaic.version = 11 : i64} {
  func.func @kernel(%arg0: i32, %arg1: memref<8x16xf32, #tpu.memory_space<vmem>>, %arg2: memref<16x64xf32, #tpu.memory_space<vmem>>, %arg3: memref<1x64xf32, #tpu.memory_space<vmem>>, %arg4: memref<32x32xf32, #tpu.memory_space<vmem>>, %arg5: memref<1x32xf32, #tpu.memory_space<vmem>>, %arg6: memref<1x32xf32, #tpu.memory_space<vmem>>, %arg7: memref<32x56xf32, #tpu.memory_space<vmem>>, %arg8: memref<1x56xf32, #tpu.memory_space<vmem>>, %arg9: memref<32x24xf32, #tpu.memory_space<vmem>>, %arg10: memref<1x24xf32, #tpu.memory_space<vmem>>, %arg11: memref<1x24xf32, #tpu.memory_space<vmem>>, %arg12: memref<8x24xf32, #tpu.memory_space<vmem>>) attributes {dimension_semantics = [#tpu.dimension_semantics<parallel>], iteration_bounds = array<i64: 1>, scalar_prefetch = 0 : i64, scratch_operands = 0 : i64, tpu.core_type = #tpu.core_type<tc>, window_params = [{transform_indices = @transform_0, window_bounds = array<i64: 8, 16>}, {pipeline_mode = #tpu.pipeline_mode<synchronous>, transform_indices = @transform_1, window_bounds = array<i64: 16, 64>}, {pipeline_mode = #tpu.pipeline_mode<synchronous>, transform_indices = @transform_2, window_bounds = array<i64: 1, 64>}, {pipeline_mode = #tpu.pipeline_mode<synchronous>, transform_indices = @transform_3, window_bounds = array<i64: 32, 32>}, {pipeline_mode = #tpu.pipeline_mode<synchronous>, transform_indices = @transform_4, window_bounds = array<i64: 1, 32>}, {pipeline_mode = #tpu.pipeline_mode<synchronous>, transform_indices = @transform_5, window_bounds = array<i64: 1, 32>}, {pipeline_mode = #tpu.pipeline_mode<synchronous>, transform_indices = @transform_6, window_bounds = array<i64: 32, 56>}, {pipeline_mode = #tpu.pipeline_mode<synchronous>, transform_indices = @transform_7, window_bounds = array<i64: 1, 56>}, {pipeline_mode = #tpu.pipeline_mode<synchronous>, transform_indices = @transform_8, window_bounds = array<i64: 32, 24>}, {pipeline_mode = #tpu.pipeline_mode<synchronous>, transform_indices = @transform_9, window_bounds = array<i64: 1, 24>}, {pipeline_mode = #tpu.pipeline_mode<synchronous>, transform_indices = @transform_10, window_bounds = array<i64: 1, 24>}, {transform_indices = @transform_11, window_bounds = array<i64: 8, 24>}]} {
    %c0 = arith.constant 0 : index
    %c0_0 = arith.constant 0 : index
    %0 = vector.load %arg1[%c0, %c0_0] : memref<8x16xf32, #tpu.memory_space<vmem>>, vector<8x16xf32>
    %c0_1 = arith.constant 0 : index
    %c0_2 = arith.constant 0 : index
    %1 = vector.load %arg2[%c0_1, %c0_2] : memref<16x64xf32, #tpu.memory_space<vmem>>, vector<16x64xf32>
    %c0_3 = arith.constant 0 : index
    %c0_4 = arith.constant 0 : index
    %2 = vector.load %arg3[%c0_3, %c0_4] : memref<1x64xf32, #tpu.memory_space<vmem>>, vector<1x64xf32>
    %c0_5 = arith.constant 0 : index
    %c0_6 = arith.constant 0 : index
    %3 = vector.load %arg4[%c0_5, %c0_6] : memref<32x32xf32, #tpu.memory_space<vmem>>, vector<32x32xf32>
    %c0_7 = arith.constant 0 : index
    %c0_8 = arith.constant 0 : index
    %4 = vector.load %arg5[%c0_7, %c0_8] : memref<1x32xf32, #tpu.memory_space<vmem>>, vector<1x32xf32>
    %c0_9 = arith.constant 0 : index
    %c0_10 = arith.constant 0 : index
    %5 = vector.load %arg6[%c0_9, %c0_10] : memref<1x32xf32, #tpu.memory_space<vmem>>, vector<1x32xf32>
    %cst = arith.constant dense<0.000000e+00> : vector<8x64xf32>
    %6 = tpu.matmul %0, %1, %cst {dimension_numbers = #tpu.dot_dimension_numbers<[1], [0], [0], [1], [0, 0, 1, 1], [], []>} : vector<8x16xf32>, vector<16x64xf32>, vector<8x64xf32> -> vector<8x64xf32>
    %7 = vector.broadcast %2 : vector<1x64xf32> to vector<8x64xf32>
    %8 = arith.addf %6, %7 : vector<8x64xf32>
    %9 = vector.extract_strided_slice %8 {offsets = [0, 0], sizes = [8, 32], strides = [1, 1]} : vector<8x64xf32> to vector<8x32xf32>
    %cst_11 = arith.constant 0.000000e+00 : f32
    %10 = vector.broadcast %cst_11 : f32 to vector<8x32xf32>
    %11 = arith.maximumf %9, %10 : vector<8x32xf32>
    %12 = vector.extract_strided_slice %8 {offsets = [0, 32], sizes = [8, 32], strides = [1, 1]} : vector<8x64xf32> to vector<8x32xf32>
    %cst_12 = arith.constant dense<0.000000e+00> : vector<8x32xf32>
    %13 = tpu.matmul %11, %3, %cst_12 {dimension_numbers = #tpu.dot_dimension_numbers<[1], [0], [0], [1], [0, 0, 1, 1], [], []>} : vector<8x32xf32>, vector<32x32xf32>, vector<8x32xf32> -> vector<8x32xf32>
    %14 = arith.addf %13, %12 : vector<8x32xf32>
    %cst_13 = arith.constant dense<0.000000e+00> : vector<8xf32>
    %15 = vector.multi_reduction <add>, %14, %cst_13 [1] : vector<8x32xf32> to vector<8xf32>
    %16 = vector.shape_cast %15 : vector<8xf32> to vector<8x1xf32>
    %cst_14 = arith.constant 3.200000e+01 : f32
    %17 = vector.broadcast %cst_14 : f32 to vector<8x1xf32>
    %18 = arith.divf %16, %17 : vector<8x1xf32>
    %19 = vector.broadcast %18 : vector<8x1xf32> to vector<8x32xf32>
    %20 = arith.subf %14, %19 : vector<8x32xf32>
    %21 = arith.mulf %20, %20 : vector<8x32xf32>
    %cst_15 = arith.constant dense<0.000000e+00> : vector<8xf32>
    %22 = vector.multi_reduction <add>, %21, %cst_15 [1] : vector<8x32xf32> to vector<8xf32>
    %23 = vector.shape_cast %22 : vector<8xf32> to vector<8x1xf32>
    %cst_16 = arith.constant 3.200000e+01 : f32
    %24 = vector.broadcast %cst_16 : f32 to vector<8x1xf32>
    %25 = arith.divf %23, %24 : vector<8x1xf32>
    %cst_17 = arith.constant 9.99999974E-6 : f32
    %26 = vector.broadcast %cst_17 : f32 to vector<8x1xf32>
    %27 = arith.addf %25, %26 : vector<8x1xf32>
    %28 = math.rsqrt %27 : vector<8x1xf32>
    %29 = vector.broadcast %28 : vector<8x1xf32> to vector<8x32xf32>
    %30 = vector.broadcast %4 : vector<1x32xf32> to vector<8x32xf32>
    %31 = arith.mulf %29, %30 : vector<8x32xf32>
    %32 = arith.mulf %20, %31 : vector<8x32xf32>
    %33 = vector.broadcast %5 : vector<1x32xf32> to vector<8x32xf32>
    %34 = arith.addf %32, %33 : vector<8x32xf32>
    %c0_18 = arith.constant 0 : index
    %c0_19 = arith.constant 0 : index
    %35 = vector.load %arg7[%c0_18, %c0_19] : memref<32x56xf32, #tpu.memory_space<vmem>>, vector<32x56xf32>
    %c0_20 = arith.constant 0 : index
    %c0_21 = arith.constant 0 : index
    %36 = vector.load %arg8[%c0_20, %c0_21] : memref<1x56xf32, #tpu.memory_space<vmem>>, vector<1x56xf32>
    %c0_22 = arith.constant 0 : index
    %c0_23 = arith.constant 0 : index
    %37 = vector.load %arg9[%c0_22, %c0_23] : memref<32x24xf32, #tpu.memory_space<vmem>>, vector<32x24xf32>
    %c0_24 = arith.constant 0 : index
    %c0_25 = arith.constant 0 : index
    %38 = vector.load %arg10[%c0_24, %c0_25] : memref<1x24xf32, #tpu.memory_space<vmem>>, vector<1x24xf32>
    %c0_26 = arith.constant 0 : index
    %c0_27 = arith.constant 0 : index
    %39 = vector.load %arg11[%c0_26, %c0_27] : memref<1x24xf32, #tpu.memory_space<vmem>>, vector<1x24xf32>
    %cst_28 = arith.constant dense<0.000000e+00> : vector<8x56xf32>
    %40 = tpu.matmul %34, %35, %cst_28 {dimension_numbers = #tpu.dot_dimension_numbers<[1], [0], [0], [1], [0, 0, 1, 1], [], []>} : vector<8x32xf32>, vector<32x56xf32>, vector<8x56xf32> -> vector<8x56xf32>
    %41 = vector.broadcast %36 : vector<1x56xf32> to vector<8x56xf32>
    %42 = arith.addf %40, %41 : vector<8x56xf32>
    %43 = vector.extract_strided_slice %42 {offsets = [0, 0], sizes = [8, 32], strides = [1, 1]} : vector<8x56xf32> to vector<8x32xf32>
    %cst_29 = arith.constant 0.000000e+00 : f32
    %44 = vector.broadcast %cst_29 : f32 to vector<8x32xf32>
    %45 = arith.maximumf %43, %44 : vector<8x32xf32>
    %46 = vector.extract_strided_slice %42 {offsets = [0, 32], sizes = [8, 24], strides = [1, 1]} : vector<8x56xf32> to vector<8x24xf32>
    %cst_30 = arith.constant dense<0.000000e+00> : vector<8x24xf32>
    %47 = tpu.matmul %45, %37, %cst_30 {dimension_numbers = #tpu.dot_dimension_numbers<[1], [0], [0], [1], [0, 0, 1, 1], [], []>} : vector<8x32xf32>, vector<32x24xf32>, vector<8x24xf32> -> vector<8x24xf32>
    %48 = arith.addf %47, %46 : vector<8x24xf32>
    %cst_31 = arith.constant dense<0.000000e+00> : vector<8xf32>
    %49 = vector.multi_reduction <add>, %48, %cst_31 [1] : vector<8x24xf32> to vector<8xf32>
    %50 = vector.shape_cast %49 : vector<8xf32> to vector<8x1xf32>
    %cst_32 = arith.constant 2.400000e+01 : f32
    %51 = vector.broadcast %cst_32 : f32 to vector<8x1xf32>
    %52 = arith.divf %50, %51 : vector<8x1xf32>
    %53 = vector.broadcast %52 : vector<8x1xf32> to vector<8x24xf32>
    %54 = arith.subf %48, %53 : vector<8x24xf32>
    %55 = arith.mulf %54, %54 : vector<8x24xf32>
    %cst_33 = arith.constant dense<0.000000e+00> : vector<8xf32>
    %56 = vector.multi_reduction <add>, %55, %cst_33 [1] : vector<8x24xf32> to vector<8xf32>
    %57 = vector.shape_cast %56 : vector<8xf32> to vector<8x1xf32>
    %cst_34 = arith.constant 2.400000e+01 : f32
    %58 = vector.broadcast %cst_34 : f32 to vector<8x1xf32>
    %59 = arith.divf %57, %58 : vector<8x1xf32>
    %cst_35 = arith.constant 9.99999974E-6 : f32
    %60 = vector.broadcast %cst_35 : f32 to vector<8x1xf32>
    %61 = arith.addf %59, %60 : vector<8x1xf32>
    %62 = math.rsqrt %61 : vector<8x1xf32>
    %63 = vector.broadcast %62 : vector<8x1xf32> to vector<8x24xf32>
    %64 = vector.broadcast %38 : vector<1x24xf32> to vector<8x24xf32>
    %65 = arith.mulf %63, %64 : vector<8x24xf32>
    %66 = arith.mulf %54, %65 : vector<8x24xf32>
    %67 = vector.broadcast %39 : vector<1x24xf32> to vector<8x24xf32>
    %68 = arith.addf %66, %67 : vector<8x24xf32>
    %c0_36 = arith.constant 0 : index
    %c0_37 = arith.constant 0 : index
    %69 = vector.load %arg12[%c0_36, %c0_37] : memref<8x24xf32, #tpu.memory_space<vmem>>, vector<8x24xf32>
    tpu.vector_store %arg12[%c0_36, %c0_37], %68 {strides = array<i32>} : memref<8x24xf32, #tpu.memory_space<vmem>>, vector<8x24xf32>,
    return
  }
  func.func @transform_0(%arg0: i32) -> (i32, i32) {
    %c0_i32 = arith.constant 0 : i32
    %c0_i32_0 = arith.constant 0 : i32
    return %arg0, %c0_i32 : i32, i32
  }
  func.func @transform_1(%arg0: i32) -> (i32, i32) {
    %c0_i32 = arith.constant 0 : i32
    %c0_i32_0 = arith.constant 0 : i32
    %c0_i32_1 = arith.constant 0 : i32
    return %c0_i32, %c0_i32_0 : i32, i32
  }
  func.func @transform_2(%arg0: i32) -> (i32, i32) {
    %c0_i32 = arith.constant 0 : i32
    %c0_i32_0 = arith.constant 0 : i32
    %c0_i32_1 = arith.constant 0 : i32
    return %c0_i32, %c0_i32_0 : i32, i32
  }
  func.func @transform_3(%arg0: i32) -> (i32, i32) {
    %c0_i32 = arith.constant 0 : i32
    %c0_i32_0 = arith.constant 0 : i32
    %c0_i32_1 = arith.constant 0 : i32
    return %c0_i32, %c0_i32_0 : i32, i32
  }
  func.func @transform_4(%arg0: i32) -> (i32, i32) {
    %c0_i32 = arith.constant 0 : i32
    %c0_i32_0 = arith.constant 0 : i32
    %c0_i32_1 = arith.constant 0 : i32
    return %c0_i32, %c0_i32_0 : i32, i32
  }
  func.func @transform_5(%arg0: i32) -> (i32, i32) {
    %c0_i32 = arith.constant 0 : i32
    %c0_i32_0 = arith.constant 0 : i32
    %c0_i32_1 = arith.constant 0 : i32
    return %c0_i32, %c0_i32_0 : i32, i32
  }
  func.func @transform_6(%arg0: i32) -> (i32, i32) {
    %c0_i32 = arith.constant 0 : i32
    %c0_i32_0 = arith.constant 0 : i32
    %c0_i32_1 = arith.constant 0 : i32
    return %c0_i32, %c0_i32_0 : i32, i32
  }
  func.func @transform_7(%arg0: i32) -> (i32, i32) {
    %c0_i32 = arith.constant 0 : i32
    %c0_i32_0 = arith.constant 0 : i32
    %c0_i32_1 = arith.constant 0 : i32
    return %c0_i32, %c0_i32_0 : i32, i32
  }
  func.func @transform_8(%arg0: i32) -> (i32, i32) {
    %c0_i32 = arith.constant 0 : i32
    %c0_i32_0 = arith.constant 0 : i32
    %c0_i32_1 = arith.constant 0 : i32
    return %c0_i32, %c0_i32_0 : i32, i32
  }
  func.func @transform_9(%arg0: i32) -> (i32, i32) {
    %c0_i32 = arith.constant 0 : i32
    %c0_i32_0 = arith.constant 0 : i32
    %c0_i32_1 = arith.constant 0 : i32
    return %c0_i32, %c0_i32_0 : i32, i32
  }
  func.func @transform_10(%arg0: i32) -> (i32, i32) {
    %c0_i32 = arith.constant 0 : i32
    %c0_i32_0 = arith.constant 0 : i32
    %c0_i32_1 = arith.constant 0 : i32
    return %c0_i32, %c0_i32_0 : i32, i32
  }
  func.func @transform_11(%arg0: i32) -> (i32, i32) {
    %c0_i32 = arith.constant 0 : i32
    %c0_i32_0 = arith.constant 0 : i32
    return %arg0, %c0_i32 : i32, i32
  }
}

</mosaic_0001>

<llo_original>
// kernel: tpu_custom_call.1
$region0: #{tpu_custom_call.1}
  #allocation0 [shape = 'u32[]', space=smem, size = 0x4, offset = 0x4, fixed_abs, tag = 'smem constant byte address 0x4 - core index']
  #allocation1 [shape = 'u32[144,128]{1,0:T(1,128)}', space=vmem, size = 0x12000, scoped, tag = 'internal scratch']
  %s0 = inlined_call_operand.hbm [shape: f32[8,16], index: 0, kind: input, shape index: {}]
  %s1 = inlined_call_operand.hbm [shape: f32[16,64], index: 1, kind: input, shape index: {}]
  %s2 = inlined_call_operand.hbm [shape: f32[1,64], index: 2, kind: input, shape index: {}]
  %s3 = inlined_call_operand.hbm [shape: f32[32,32], index: 3, kind: input, shape index: {}]
  %s4 = inlined_call_operand.hbm [shape: f32[1,32], index: 4, kind: input, shape index: {}]
  %s5 = inlined_call_operand.hbm [shape: f32[1,32], index: 5, kind: input, shape index: {}]
  %s6 = inlined_call_operand.hbm [shape: f32[32,56], index: 6, kind: input, shape index: {}]
  %s7 = inlined_call_operand.hbm [shape: f32[1,56], index: 7, kind: input, shape index: {}]
  %s8 = inlined_call_operand.hbm [shape: f32[32,24], index: 8, kind: input, shape index: {}]
  %s9 = inlined_call_operand.hbm [shape: f32[1,24], index: 9, kind: input, shape index: {}]
  %s10 = inlined_call_operand.hbm [shape: f32[1,24], index: 10, kind: input, shape index: {}]
  %s11 = inlined_call_operand.hbm [shape: f32[8,24], index: 11, kind: output, shape index: {}]
  %s12 = sld [smem:[#allocation0]]
  $region98: #{tpu_custom_call.1} parent=0
    _
  %s14 = ssub.s32 1, %s12
  %s15 = scalar_select 0, %s14, %s12
  $region1: #{tpu_custom_call.1} parent=0
    #allocation2 [shape = 'u8[4096]{0}', space=vmem, size = 0x1000, scoped, tag = 'input window, operand 0, single buffered']
    #allocation3 [shape = 's32[1]{0}', space=sflag, size = 0x4, scoped, tag = 'scoped memory for tpu_custom_call.1']
    #allocation4 [shape = 's32[1]{0}', space=sflag, size = 0x4, scoped, tag = 'scoped memory for tpu_custom_call.1']
    #allocation5 [shape = 'u8[8192]{0}', space=vmem, size = 0x2000, scoped, tag = 'input window, operand 1, single buffered']
    #allocation6 [shape = 's32[1]{0}', space=sflag, size = 0x4, scoped, tag = 'scoped memory for tpu_custom_call.1']
    #allocation7 [shape = 'u8[512]{0}', space=vmem, size = 0x400, scoped, tag = 'input window, operand 2, single buffered']
    #allocation8 [shape = 'u8[16384]{0}', space=vmem, size = 0x4000, scoped, tag = 'input window, operand 3, single buffered']
    #allocation9 [shape = 's32[1]{0}', space=sflag, size = 0x4, scoped, tag = 'scoped memory for tpu_custom_call.1']
    #allocation10 [shape = 'u8[512]{0}', space=vmem, size = 0x400, scoped, tag = 'input window, operand 4, single buffered']
    #allocation11 [shape = 'u8[512]{0}', space=vmem, size = 0x400, scoped, tag = 'input window, operand 5, single buffered']
    #allocation12 [shape = 's32[1]{0}', space=sflag, size = 0x4, scoped, tag = 'scoped memory for tpu_custom_call.1']
    #allocation13 [shape = 'u8[16384]{0}', space=vmem, size = 0x4000, scoped, tag = 'input window, operand 6, single buffered']
    #allocation14 [shape = 'u8[512]{0}', space=vmem, size = 0x400, scoped, tag = 'input window, operand 7, single buffered']
    #allocation15 [shape = 's32[1]{0}', space=sflag, size = 0x4, scoped, tag = 'scoped memory for tpu_custom_call.1']
    #allocation16 [shape = 'u8[16384]{0}', space=vmem, size = 0x4000, scoped, tag = 'input window, operand 8, single buffered']
    #allocation17 [shape = 'u8[512]{0}', space=vmem, size = 0x400, scoped, tag = 'input window, operand 9, single buffered']
    #allocation18 [shape = 's32[1]{0}', space=sflag, size = 0x4, scoped, tag = 'scoped memory for tpu_custom_call.1']
    #allocation19 [shape = 'u8[512]{0}', space=vmem, size = 0x400, scoped, tag = 'input window, operand 10, single buffered']
    #allocation20 [shape = 'u8[4096]{0}', space=vmem, size = 0x1000, scoped, tag = 'output window, operand 0, single buffered']
    %16 = vsyncpa [#allocation3], 0
    %17 = vsyncpa [#allocation6], 0
    %18 = vsyncpa [#allocation9], 0
    %19 = vsyncpa [#allocation12], 0
    %20 = vsyncpa [#allocation15], 0
    %21 = vsyncpa [#allocation18], 0
    %22 = vsyncpa [#allocation4], 0
    // Predicated region
    $region2: #{tpu_custom_call.1} parent=1 // pred_check
      _
    $region3: #{tpu_custom_call.1} parent=1 // pred_check_branch
      %24 = sbr.rel (0) target = $region5
    $region4: #{tpu_custom_call.1} parent=1 // pred_region
      %s26 = ssub.s32 128, 128
      %27 = vsyncadd [#allocation3], %s26
      %s29 = sshll.u32 [#allocation2], 4
      %s30 = int_to_ptr.vmem [resolvable:$true] %s29
      %32 = dma.hbm_to_vmem [thread:$0]  %s0, 128, %s30, [#allocation3]
    $region5: #{tpu_custom_call.1} parent=1 // pred_fallthru
      _
    // Predicated region
    $region6: #{tpu_custom_call.1} parent=1 // pred_check
      _
    $region7: #{tpu_custom_call.1} parent=1 // pred_check_branch
      %34 = sbr.rel (0) target = $region9
    $region8: #{tpu_custom_call.1} parent=1 // pred_region
      %s36 = ssub.s32 256, 256
      %37 = vsyncadd [#allocation6], %s36
      %s38 = sshll.u32 [#allocation5], 4
      %s39 = int_to_ptr.vmem [resolvable:$true] %s38
      %44 = dma.hbm_to_vmem [thread:$0]  %s1, 256, %s39, [#allocation6], 128, 128, 8
    $region9: #{tpu_custom_call.1} parent=1 // pred_fallthru
      _
    // Predicated region
    $region10: #{tpu_custom_call.1} parent=1 // pred_check
      _
    $region11: #{tpu_custom_call.1} parent=1 // pred_check_branch
      %46 = sbr.rel (0) target = $region13
    $region12: #{tpu_custom_call.1} parent=1 // pred_region
      %s48 = ssub.s32 16, 16
      %49 = vsyncadd [#allocation6], %s48
      %s51 = sshll.u32 [#allocation7], 4
      %s52 = int_to_ptr.vmem [resolvable:$true] %s51
      %54 = dma.hbm_to_vmem [thread:$0]  %s2, 16, %s52, [#allocation6]
    $region13: #{tpu_custom_call.1} parent=1 // pred_fallthru
      _
    // Predicated region
    $region14: #{tpu_custom_call.1} parent=1 // pred_check
      _
    $region15: #{tpu_custom_call.1} parent=1 // pred_check_branch
      %56 = sbr.rel (0) target = $region17
    $region16: #{tpu_custom_call.1} parent=1 // pred_region
      %s58 = ssub.s32 512, 512
      %59 = vsyncadd [#allocation9], %s58
      %s60 = sshll.u32 [#allocation8], 4
      %s61 = int_to_ptr.vmem [resolvable:$true] %s60
      %66 = dma.hbm_to_vmem [thread:$0]  %s3, 512, %s61, [#allocation9], 128, 128, 8
    $region17: #{tpu_custom_call.1} parent=1 // pred_fallthru
      _
    // Predicated region
    $region18: #{tpu_custom_call.1} parent=1 // pred_check
      _
    $region19: #{tpu_custom_call.1} parent=1 // pred_check_branch
      %68 = sbr.rel (0) target = $region21
    $region20: #{tpu_custom_call.1} parent=1 // pred_region
      %s70 = ssub.s32 16, 16
      %71 = vsyncadd [#allocation9], %s70
      %s73 = sshll.u32 [#allocation10], 4
      %s74 = int_to_ptr.vmem [resolvable:$true] %s73
      %76 = dma.hbm_to_vmem [thread:$0]  %s4, 16, %s74, [#allocation9]
    $region21: #{tpu_custom_call.1} parent=1 // pred_fallthru
      _
    // Predicated region
    $region22: #{tpu_custom_call.1} parent=1 // pred_check
      _
    $region23: #{tpu_custom_call.1} parent=1 // pred_check_branch
      %78 = sbr.rel (0) target = $region25
    $region24: #{tpu_custom_call.1} parent=1 // pred_region
      %s80 = ssub.s32 16, 16
      %81 = vsyncadd [#allocation12], %s80
      %s83 = sshll.u32 [#allocation11], 4
      %s84 = int_to_ptr.vmem [resolvable:$true] %s83
      %86 = dma.hbm_to_vmem [thread:$0]  %s5, 16, %s84, [#allocation12]
    $region25: #{tpu_custom_call.1} parent=1 // pred_fallthru
      _
    // Predicated region
    $region26: #{tpu_custom_call.1} parent=1 // pred_check
      _
    $region27: #{tpu_custom_call.1} parent=1 // pred_check_branch
      %88 = sbr.rel (0) target = $region29
    $region28: #{tpu_custom_call.1} parent=1 // pred_region
      %s90 = ssub.s32 512, 512
      %91 = vsyncadd [#allocation12], %s90
      %s92 = sshll.u32 [#allocation13], 4
      %s93 = int_to_ptr.vmem [resolvable:$true] %s92
      %98 = dma.hbm_to_vmem [thread:$0]  %s6, 512, %s93, [#allocation12], 128, 128, 8
    $region29: #{tpu_custom_call.1} parent=1 // pred_fallthru
      _
    // Predicated region
    $region30: #{tpu_custom_call.1} parent=1 // pred_check
      _
    $region31: #{tpu_custom_call.1} parent=1 // pred_check_branch
      %100 = sbr.rel (0) target = $region33
    $region32: #{tpu_custom_call.1} parent=1 // pred_region
      %s102 = ssub.s32 16, 16
      %103 = vsyncadd [#allocation15], %s102
      %s105 = sshll.u32 [#allocation14], 4
      %s106 = int_to_ptr.vmem [resolvable:$true] %s105
      %108 = dma.hbm_to_vmem [thread:$0]  %s7, 16, %s106, [#allocation15]
    $region33: #{tpu_custom_call.1} parent=1 // pred_fallthru
      _
    // Predicated region
    $region34: #{tpu_custom_call.1} parent=1 // pred_check
      _
    $region35: #{tpu_custom_call.1} parent=1 // pred_check_branch
      %110 = sbr.rel (0) target = $region37
    $region36: #{tpu_custom_call.1} parent=1 // pred_region
      %s112 = ssub.s32 512, 512
      %113 = vsyncadd [#allocation15], %s112
      %s114 = sshll.u32 [#allocation16], 4
      %s115 = int_to_ptr.vmem [resolvable:$true] %s114
      %120 = dma.hbm_to_vmem [thread:$0]  %s8, 512, %s115, [#allocation15], 128, 128, 8
    $region37: #{tpu_custom_call.1} parent=1 // pred_fallthru
      _
    // Predicated region
    $region38: #{tpu_custom_call.1} parent=1 // pred_check
      _
    $region39: #{tpu_custom_call.1} parent=1 // pred_check_branch
      %122 = sbr.rel (0) target = $region41
    $region40: #{tpu_custom_call.1} parent=1 // pred_region
      %s124 = ssub.s32 16, 16
      %125 = vsyncadd [#allocation18], %s124
      %s127 = sshll.u32 [#allocation17], 4
      %s128 = int_to_ptr.vmem [resolvable:$true] %s127
      %130 = dma.hbm_to_vmem [thread:$0]  %s9, 16, %s128, [#allocation18]
    $region41: #{tpu_custom_call.1} parent=1 // pred_fallthru
      _
    // Predicated region
    $region42: #{tpu_custom_call.1} parent=1 // pred_check
      _
    $region43: #{tpu_custom_call.1} parent=1 // pred_check_branch
      %132 = sbr.rel (0) target = $region45
    $region44: #{tpu_custom_call.1} parent=1 // pred_region
      %s134 = ssub.s32 16, 16
      %135 = vsyncadd [#allocation18], %s134
      %s137 = sshll.u32 [#allocation19], 4
      %s138 = int_to_ptr.vmem [resolvable:$true] %s137
      %140 = dma.hbm_to_vmem [thread:$0]  %s10, 16, %s138, [#allocation18]
    $region45: #{tpu_custom_call.1} parent=1 // pred_fallthru
      _
    // Predicated region
    $region46: #{tpu_custom_call.1} parent=1 // pred_check
      _
    $region47: #{tpu_custom_call.1} parent=1 // pred_check_branch
      %142 = sbr.rel (0) target = $region49
    $region48: #{tpu_custom_call.1} parent=1 // pred_region
      %143 = dma.done [#allocation3], 128
    $region49: #{tpu_custom_call.1} parent=1 // pred_fallthru
      _
    // Predicated region
    $region50: #{tpu_custom_call.1} parent=1 // pred_check
      _
    $region51: #{tpu_custom_call.1} parent=1 // pred_check_branch
      %145 = sbr.rel (0) target = $region53
    $region52: #{tpu_custom_call.1} parent=1 // pred_region
      %146 = dma.done [#allocation6], 256
    $region53: #{tpu_custom_call.1} parent=1 // pred_fallthru
      _
    // Predicated region
    $region54: #{tpu_custom_call.1} parent=1 // pred_check
      _
    $region55: #{tpu_custom_call.1} parent=1 // pred_check_branch
      %148 = sbr.rel (0) target = $region57
    $region56: #{tpu_custom_call.1} parent=1 // pred_region
      %149 = dma.done [#allocation6], 16
    $region57: #{tpu_custom_call.1} parent=1 // pred_fallthru
      _
    // Predicated region
    $region58: #{tpu_custom_call.1} parent=1 // pred_check
      _
    $region59: #{tpu_custom_call.1} parent=1 // pred_check_branch
      %151 = sbr.rel (0) target = $region61
    $region60: #{tpu_custom_call.1} parent=1 // pred_region
      %152 = dma.done [#allocation9], 512
    $region61: #{tpu_custom_call.1} parent=1 // pred_fallthru
      _
    // Predicated region
    $region62: #{tpu_custom_call.1} parent=1 // pred_check
      _
    $region63: #{tpu_custom_call.1} parent=1 // pred_check_branch
      %154 = sbr.rel (0) target = $region65
    $region64: #{tpu_custom_call.1} parent=1 // pred_region
      %155 = dma.done [#allocation9], 16
    $region65: #{tpu_custom_call.1} parent=1 // pred_fallthru
      _
    // Predicated region
    $region66: #{tpu_custom_call.1} parent=1 // pred_check
      _
    $region67: #{tpu_custom_call.1} parent=1 // pred_check_branch
      %157 = sbr.rel (0) target = $region69
    $region68: #{tpu_custom_call.1} parent=1 // pred_region
      %158 = dma.done [#allocation12], 16
    $region69: #{tpu_custom_call.1} parent=1 // pred_fallthru
      _
    // Predicated region
    $region70: #{tpu_custom_call.1} parent=1 // pred_check
      _
    $region71: #{tpu_custom_call.1} parent=1 // pred_check_branch
      %160 = sbr.rel (0) target = $region73
    $region72: #{tpu_custom_call.1} parent=1 // pred_region
      %161 = dma.done [#allocation12], 512
    $region73: #{tpu_custom_call.1} parent=1 // pred_fallthru
      _
    // Predicated region
    $region74: #{tpu_custom_call.1} parent=1 // pred_check
      _
    $region75: #{tpu_custom_call.1} parent=1 // pred_check_branch
      %163 = sbr.rel (0) target = $region77
    $region76: #{tpu_custom_call.1} parent=1 // pred_region
      %164 = dma.done [#allocation15], 16
    $region77: #{tpu_custom_call.1} parent=1 // pred_fallthru
      _
    // Predicated region
    $region78: #{tpu_custom_call.1} parent=1 // pred_check
      _
    $region79: #{tpu_custom_call.1} parent=1 // pred_check_branch
      %166 = sbr.rel (0) target = $region81
    $region80: #{tpu_custom_call.1} parent=1 // pred_region
      %167 = dma.done [#allocation15], 512
    $region81: #{tpu_custom_call.1} parent=1 // pred_fallthru
      _
    // Predicated region
    $region82: #{tpu_custom_call.1} parent=1 // pred_check
      _
    $region83: #{tpu_custom_call.1} parent=1 // pred_check_branch
      %169 = sbr.rel (0) target = $region85
    $region84: #{tpu_custom_call.1} parent=1 // pred_region
      %170 = dma.done [#allocation18], 16
    $region85: #{tpu_custom_call.1} parent=1 // pred_fallthru
      _
    // Predicated region
    $region86: #{tpu_custom_call.1} parent=1 // pred_check
      _
    $region87: #{tpu_custom_call.1} parent=1 // pred_check_branch
      %172 = sbr.rel (0) target = $region89
    $region88: #{tpu_custom_call.1} parent=1 // pred_region
      %173 = dma.done [#allocation18], 16
    $region89: #{tpu_custom_call.1} parent=1 // pred_fallthru
      _
    %v174 = vld [vmem:[#allocation2] sm:$0xff]
    %v175 = vld [vmem:[#allocation5] sm:$0xff]
    %v176 = vld [vmem:[#allocation5 + $0x8] sm:$0xff]
    %v177 = vld [vmem:[#allocation7] sm:$0x1]
    %v178 = vld [vmem:[#allocation8] sm:$0xff]
    %v179 = vld [vmem:[#allocation8 + $0x8] sm:$0xff]
    %v180 = vld [vmem:[#allocation8 + $0x10] sm:$0xff]
    %v181 = vld [vmem:[#allocation8 + $0x18] sm:$0xff]
    %v182 = vld [vmem:[#allocation10] sm:$0x1]
    %v183 = vld [vmem:[#allocation11] sm:$0x1]
    %v185 = vlaneseq
    %v186 = vshrl.u32 %v185, 7
    %v187 = vsub.s32 0, %v186
    %v188 = vrot.slane %v177, %v187
    %vm190 = vcmask 130048
    %v192 = vsel %vm190, %v174, 0
    %194 = vmatprep.subr.mxu0 0.0
    %195 = vmatpush1.msra.mxu0 %v175
    %196 = vmatprep.subr.mxu0 0.0
    %197 = vmatpush1.msra.mxu0 %v176
    %198 = vmatprep.subr.mxu0 0.0
    %199 = vmatpush1.msra.mxu0 0.0
    %200 = vmatprep.subr.mxu0 0.0
    %201 = vmatpush1.msra.mxu0 0.0
    %202 = vmatprep.subr.mxu0 0.0
    %203 = vmatpush1.msra.mxu0 0.0
    %204 = vmatprep.subr.mxu0 0.0
    %205 = vmatpush1.msra.mxu0 0.0
    %206 = vmatprep.subr.mxu0 0.0
    %207 = vmatpush1.msra.mxu0 0.0
    %208 = vmatprep.subr.mxu0 0.0
    %209 = vmatpush1.msra.mxu0 0.0
    %210 = vmatprep.subr.mxu0 0.0
    %211 = vmatpush1.msra.mxu0 0.0
    %212 = vmatprep.subr.mxu0 0.0
    %213 = vmatpush1.msra.mxu0 0.0
    %214 = vmatprep.subr.mxu0 0.0
    %215 = vmatpush1.msra.mxu0 0.0
    %216 = vmatprep.subr.mxu0 0.0
    %217 = vmatpush1.msra.mxu0 0.0
    %218 = vmatprep.subr.mxu0 0.0
    %219 = vmatpush1.msra.mxu0 0.0
    %220 = vmatprep.subr.mxu0 0.0
    %221 = vmatpush1.msra.mxu0 0.0
    %222 = vmatprep.subr.mxu0 0.0
    %223 = vmatpush1.msra.mxu0 0.0
    %224 = vmatprep.subr.mxu0 0.0
    %225 = vmatpush1.msra.mxu0 0.0
    %226 = vmatprep.subr.mxu0 0.0
    %227 = vmatpush1.msra.mxu0 0.0
    %228 = vmatprep.subr.mxu0 0.0
    %229 = vmatpush1.msra.mxu0 0.0
    %230 = vmatprep.subr.mxu0 0.0
    %231 = vmatpush1.msra.mxu0 0.0
    %232 = vmatprep.subr.mxu0 0.0
    %233 = vmatpush1.msra.mxu0 0.0
    %234 = vmatprep.subr.mxu0 0.0
    %235 = vmatpush1.msra.mxu0 0.0
    %236 = vmatprep.subr.mxu0 0.0
    %237 = vmatpush1.msra.mxu0 0.0
    %238 = vmatprep.subr.mxu0 0.0
    %239 = vmatpush1.msra.mxu0 0.0
    %240 = vmatprep.subr.mxu0 0.0
    %241 = vmatpush1.msra.mxu0 0.0
    %242 = vmatprep.subr.mxu0 0.0
    %243 = vmatpush1.msra.mxu0 0.0
    %244 = vmatprep.subr.mxu0 0.0
    %245 = vmatpush1.msra.mxu0 0.0
    %246 = vmatprep.subr.mxu0 0.0
    %247 = vmatpush1.msra.mxu0 0.0
    %248 = vmatprep.subr.mxu0 0.0
    %249 = vmatpush1.msra.mxu0 0.0
    %250 = vmatprep.subr.mxu0 0.0
    %251 = vmatpush1.msra.mxu0 0.0
    %252 = vmatprep.subr.mxu0 0.0
    %253 = vmatpush1.msra.mxu0 0.0
    %254 = vmatprep.subr.mxu0 0.0
    %255 = vmatpush1.msra.mxu0 0.0
    %256 = vmatprep.subr.mxu0 0.0
    %257 = vmatpush1.msra.mxu0 0.0
    %258 = vmatprep.mubr.f32.mxu0 0.0
    %259 = vmatmul.mubr.f32.gmra.mrb[0].mxu0 %v192
    %v260 = vpop.f32.mrb[0].mxu0
    %v261 = vadd.f32 %v188, %v260
    %v262 = vpop.f32.mrb[0].mxu0
    %263 = vdwg.mxu0
    %v264 = vmax.f32 %v261, 0.0
    %266 = vrot.lane.b32.xlu0 %v261, 96
    %v267 = vpop.permute.xlu0 %266
    %vm269 = vcmask 261120
    %v271 = vsel %vm269, %v264, 0
    %273 = vmatprep.subr.mxu0 0.0
    %274 = vmatpush1.msra.mxu0 %v178
    %275 = vmatprep.subr.mxu0 0.0
    %276 = vmatpush1.msra.mxu0 %v179
    %277 = vmatprep.subr.mxu0 0.0
    %278 = vmatpush1.msra.mxu0 %v180
    %279 = vmatprep.subr.mxu0 0.0
    %280 = vmatpush1.msra.mxu0 %v181
    %281 = vmatprep.subr.mxu0 0.0
    %282 = vmatpush1.msra.mxu0 0.0
    %283 = vmatprep.subr.mxu0 0.0
    %284 = vmatpush1.msra.mxu0 0.0
    %285 = vmatprep.subr.mxu0 0.0
    %286 = vmatpush1.msra.mxu0 0.0
    %287 = vmatprep.subr.mxu0 0.0
    %288 = vmatpush1.msra.mxu0 0.0
    %289 = vmatprep.subr.mxu0 0.0
    %290 = vmatpush1.msra.mxu0 0.0
    %291 = vmatprep.subr.mxu0 0.0
    %292 = vmatpush1.msra.mxu0 0.0
    %293 = vmatprep.subr.mxu0 0.0
    %294 = vmatpush1.msra.mxu0 0.0
    %295 = vmatprep.subr.mxu0 0.0
    %296 = vmatpush1.msra.mxu0 0.0
    %297 = vmatprep.subr.mxu0 0.0
    %298 = vmatpush1.msra.mxu0 0.0
    %299 = vmatprep.subr.mxu0 0.0
    %300 = vmatpush1.msra.mxu0 0.0
    %301 = vmatprep.subr.mxu0 0.0
    %302 = vmatpush1.msra.mxu0 0.0
    %303 = vmatprep.subr.mxu0 0.0
    %304 = vmatpush1.msra.mxu0 0.0
    %305 = vmatprep.subr.mxu0 0.0
    %306 = vmatpush1.msra.mxu0 0.0
    %307 = vmatprep.subr.mxu0 0.0
    %308 = vmatpush1.msra.mxu0 0.0
    %309 = vmatprep.subr.mxu0 0.0
    %310 = vmatpush1.msra.mxu0 0.0
    %311 = vmatprep.subr.mxu0 0.0
    %312 = vmatpush1.msra.mxu0 0.0
    %313 = vmatprep.subr.mxu0 0.0
    %314 = vmatpush1.msra.mxu0 0.0
    %315 = vmatprep.subr.mxu0 0.0
    %316 = vmatpush1.msra.mxu0 0.0
    %317 = vmatprep.subr.mxu0 0.0
    %318 = vmatpush1.msra.mxu0 0.0
    %319 = vmatprep.subr.mxu0 0.0
    %320 = vmatpush1.msra.mxu0 0.0
    %321 = vmatprep.subr.mxu0 0.0
    %322 = vmatpush1.msra.mxu0 0.0
    %323 = vmatprep.subr.mxu0 0.0
    %324 = vmatpush1.msra.mxu0 0.0
    %325 = vmatprep.subr.mxu0 0.0
    %326 = vmatpush1.msra.mxu0 0.0
    %327 = vmatprep.subr.mxu0 0.0
    %328 = vmatpush1.msra.mxu0 0.0
    %329 = vmatprep.subr.mxu0 0.0
    %330 = vmatpush1.msra.mxu0 0.0
    %331 = vmatprep.subr.mxu0 0.0
    %332 = vmatpush1.msra.mxu0 0.0
    %333 = vmatprep.subr.mxu0 0.0
    %334 = vmatpush1.msra.mxu0 0.0
    %335 = vmatprep.subr.mxu0 0.0
    %336 = vmatpush1.msra.mxu0 0.0
    %337 = vmatprep.mubr.f32.mxu0 0.0
    %338 = vmatmul.mubr.f32.gmra.mrb[0].mxu0 %v271
    %v339 = vpop.f32.mrb[0].mxu0
    %v340 = vadd.f32 %v267, %v339
    %v341 = vpop.f32.mrb[0].mxu0
    %342 = vdwg.mxu0
    %v343 = vsel %vm269, %v340, 0.0
    %344 = vadd.xlane.f32.xlu0 %v343
    %v345 = vpop.xlane.xlu0 %344
    %v346 = vrcp.pop 32.0
    %v347 = vmul.f32 %v345, %v346
    %v348 = vsub.f32 %v340, %v347
    %v349 = vmul.f32 %v348, %v348
    %v350 = vsel %vm269, %v349, 0.0
    %351 = vadd.xlane.f32.xlu0 %v350
    %v352 = vpop.xlane.xlu0 %351
    %v353 = vmul.f32 %v352, %v346
    %v354 = vadd.f32 %v353, 1e-05
    %v355 = vrsqrt.pop %v354
    %v357 = vlaneseq
    %v358 = vshrl.u32 %v357, 7
    %v359 = vsub.s32 0, %v358
    %v360 = vrot.slane %v182, %v359
    %v362 = vmul.f32 %v355, %v360
    %v363 = vmul.f32 %v348, %v362
    %v365 = vlaneseq
    %v366 = vshrl.u32 %v365, 7
    %v367 = vsub.s32 0, %v366
    %v368 = vrot.slane %v183, %v367
    %v370 = vadd.f32 %v363, %v368
    %v371 = vld [vmem:[#allocation13] sm:$0xff]
    %v372 = vld [vmem:[#allocation13 + $0x8] sm:$0xff]
    %v373 = vld [vmem:[#allocation13 + $0x10] sm:$0xff]
    %v374 = vld [vmem:[#allocation13 + $0x18] sm:$0xff]
    %v375 = vld [vmem:[#allocation14] sm:$0x1]
    %v376 = vld [vmem:[#allocation16] sm:$0xff]
    %v377 = vld [vmem:[#allocation16 + $0x8] sm:$0xff]
    %v378 = vld [vmem:[#allocation16 + $0x10] sm:$0xff]
    %v379 = vld [vmem:[#allocation16 + $0x18] sm:$0xff]
    %v380 = vld [vmem:[#allocation17] sm:$0x1]
    %v381 = vld [vmem:[#allocation19] sm:$0x1]
    %v383 = vlaneseq
    %v384 = vshrl.u32 %v383, 7
    %v385 = vsub.s32 0, %v384
    %v386 = vrot.slane %v375, %v385
    %v389 = vsel %vm269, %v370, 0
    %391 = vmatprep.subr.mxu0 0.0
    %392 = vmatpush1.msra.mxu0 %v371
    %393 = vmatprep.subr.mxu0 0.0
    %394 = vmatpush1.msra.mxu0 %v372
    %395 = vmatprep.subr.mxu0 0.0
    %396 = vmatpush1.msra.mxu0 %v373
    %397 = vmatprep.subr.mxu0 0.0
    %398 = vmatpush1.msra.mxu0 %v374
    %399 = vmatprep.subr.mxu0 0.0
    %400 = vmatpush1.msra.mxu0 0.0
    %401 = vmatprep.subr.mxu0 0.0
    %402 = vmatpush1.msra.mxu0 0.0
    %403 = vmatprep.subr.mxu0 0.0
    %404 = vmatpush1.msra.mxu0 0.0
    %405 = vmatprep.subr.mxu0 0.0
    %406 = vmatpush1.msra.mxu0 0.0
    %407 = vmatprep.subr.mxu0 0.0
    %408 = vmatpush1.msra.mxu0 0.0
    %409 = vmatprep.subr.mxu0 0.0
    %410 = vmatpush1.msra.mxu0 0.0
    %411 = vmatprep.subr.mxu0 0.0
    %412 = vmatpush1.msra.mxu0 0.0
    %413 = vmatprep.subr.mxu0 0.0
    %414 = vmatpush1.msra.mxu0 0.0
    %415 = vmatprep.subr.mxu0 0.0
    %416 = vmatpush1.msra.mxu0 0.0
    %417 = vmatprep.subr.mxu0 0.0
    %418 = vmatpush1.msra.mxu0 0.0
    %419 = vmatprep.subr.mxu0 0.0
    %420 = vmatpush1.msra.mxu0 0.0
    %421 = vmatprep.subr.mxu0 0.0
    %422 = vmatpush1.msra.mxu0 0.0
    %423 = vmatprep.subr.mxu0 0.0
    %424 = vmatpush1.msra.mxu0 0.0
    %425 = vmatprep.subr.mxu0 0.0
    %426 = vmatpush1.msra.mxu0 0.0
    %427 = vmatprep.subr.mxu0 0.0
    %428 = vmatpush1.msra.mxu0 0.0
    %429 = vmatprep.subr.mxu0 0.0
    %430 = vmatpush1.msra.mxu0 0.0
    %431 = vmatprep.subr.mxu0 0.0
    %432 = vmatpush1.msra.mxu0 0.0
    %433 = vmatprep.subr.mxu0 0.0
    %434 = vmatpush1.msra.mxu0 0.0
    %435 = vmatprep.subr.mxu0 0.0
    %436 = vmatpush1.msra.mxu0 0.0
    %437 = vmatprep.subr.mxu0 0.0
    %438 = vmatpush1.msra.mxu0 0.0
    %439 = vmatprep.subr.mxu0 0.0
    %440 = vmatpush1.msra.mxu0 0.0
    %441 = vmatprep.subr.mxu0 0.0
    %442 = vmatpush1.msra.mxu0 0.0
    %443 = vmatprep.subr.mxu0 0.0
    %444 = vmatpush1.msra.mxu0 0.0
    %445 = vmatprep.subr.mxu0 0.0
    %446 = vmatpush1.msra.mxu0 0.0
    %447 = vmatprep.subr.mxu0 0.0
    %448 = vmatpush1.msra.mxu0 0.0
    %449 = vmatprep.subr.mxu0 0.0
    %450 = vmatpush1.msra.mxu0 0.0
    %451 = vmatprep.subr.mxu0 0.0
    %452 = vmatpush1.msra.mxu0 0.0
    %453 = vmatprep.subr.mxu0 0.0
    %454 = vmatpush1.msra.mxu0 0.0
    %455 = vmatprep.mubr.f32.mxu0 0.0
    %456 = vmatmul.mubr.f32.gmra.mrb[0].mxu0 %v389
    %v457 = vpop.f32.mrb[0].mxu0
    %v458 = vadd.f32 %v386, %v457
    %v459 = vpop.f32.mrb[0].mxu0
    %460 = vdwg.mxu0
    %v461 = vmax.f32 %v458, 0.0
    %463 = vrot.lane.b32.xlu0 %v458, 96
    %v464 = vpop.permute.xlu0 %463
    %v467 = vsel %vm269, %v461, 0
    %469 = vmatprep.subr.mxu0 0.0
    %470 = vmatpush1.msra.mxu0 %v376
    %471 = vmatprep.subr.mxu0 0.0
    %472 = vmatpush1.msra.mxu0 %v377
    %473 = vmatprep.subr.mxu0 0.0
    %474 = vmatpush1.msra.mxu0 %v378
    %475 = vmatprep.subr.mxu0 0.0
    %476 = vmatpush1.msra.mxu0 %v379
    %477 = vmatprep.subr.mxu0 0.0
    %478 = vmatpush1.msra.mxu0 0.0
    %479 = vmatprep.subr.mxu0 0.0
    %480 = vmatpush1.msra.mxu0 0.0
    %481 = vmatprep.subr.mxu0 0.0
    %482 = vmatpush1.msra.mxu0 0.0
    %483 = vmatprep.subr.mxu0 0.0
    %484 = vmatpush1.msra.mxu0 0.0
    %485 = vmatprep.subr.mxu0 0.0
    %486 = vmatpush1.msra.mxu0 0.0
    %487 = vmatprep.subr.mxu0 0.0
    %488 = vmatpush1.msra.mxu0 0.0
    %489 = vmatprep.subr.mxu0 0.0
    %490 = vmatpush1.msra.mxu0 0.0
    %491 = vmatprep.subr.mxu0 0.0
    %492 = vmatpush1.msra.mxu0 0.0
    %493 = vmatprep.subr.mxu0 0.0
    %494 = vmatpush1.msra.mxu0 0.0
    %495 = vmatprep.subr.mxu0 0.0
    %496 = vmatpush1.msra.mxu0 0.0
    %497 = vmatprep.subr.mxu0 0.0
    %498 = vmatpush1.msra.mxu0 0.0
    %499 = vmatprep.subr.mxu0 0.0
    %500 = vmatpush1.msra.mxu0 0.0
    %501 = vmatprep.subr.mxu0 0.0
    %502 = vmatpush1.msra.mxu0 0.0
    %503 = vmatprep.subr.mxu0 0.0
    %504 = vmatpush1.msra.mxu0 0.0
    %505 = vmatprep.subr.mxu0 0.0
    %506 = vmatpush1.msra.mxu0 0.0
    %507 = vmatprep.subr.mxu0 0.0
    %508 = vmatpush1.msra.mxu0 0.0
    %509 = vmatprep.subr.mxu0 0.0
    %510 = vmatpush1.msra.mxu0 0.0
    %511 = vmatprep.subr.mxu0 0.0
    %512 = vmatpush1.msra.mxu0 0.0
    %513 = vmatprep.subr.mxu0 0.0
    %514 = vmatpush1.msra.mxu0 0.0
    %515 = vmatprep.subr.mxu0 0.0
    %516 = vmatpush1.msra.mxu0 0.0
    %517 = vmatprep.subr.mxu0 0.0
    %518 = vmatpush1.msra.mxu0 0.0
    %519 = vmatprep.subr.mxu0 0.0
    %520 = vmatpush1.msra.mxu0 0.0
    %521 = vmatprep.subr.mxu0 0.0
    %522 = vmatpush1.msra.mxu0 0.0
    %523 = vmatprep.subr.mxu0 0.0
    %524 = vmatpush1.msra.mxu0 0.0
    %525 = vmatprep.subr.mxu0 0.0
    %526 = vmatpush1.msra.mxu0 0.0
    %527 = vmatprep.subr.mxu0 0.0
    %528 = vmatpush1.msra.mxu0 0.0
    %529 = vmatprep.subr.mxu0 0.0
    %530 = vmatpush1.msra.mxu0 0.0
    %531 = vmatprep.subr.mxu0 0.0
    %532 = vmatpush1.msra.mxu0 0.0
    %533 = vmatprep.mubr.f32.mxu0 0.0
    %534 = vmatmul.mubr.f32.gmra.mrb[0].mxu0 %v467
    %v535 = vpop.f32.mrb[0].mxu0
    %v536 = vadd.f32 %v464, %v535
    %v537 = vpop.f32.mrb[0].mxu0
    %538 = vdwg.mxu0
    %vm539 = vcmask 195584
    %v540 = vsel %vm539, %v536, 0.0
    %541 = vadd.xlane.f32.xlu0 %v540
    %v542 = vpop.xlane.xlu0 %541
    %v543 = vrcp.pop 24.0
    %v544 = vmul.f32 %v542, %v543
    %v545 = vsub.f32 %v536, %v544
    %v546 = vmul.f32 %v545, %v545
    %v547 = vsel %vm539, %v546, 0.0
    %548 = vadd.xlane.f32.xlu0 %v547
    %v549 = vpop.xlane.xlu0 %548
    %v550 = vmul.f32 %v549, %v543
    %v551 = vadd.f32 %v550, 1e-05
    %v552 = vrsqrt.pop %v551
    %v554 = vlaneseq
    %v555 = vshrl.u32 %v554, 7
    %v556 = vsub.s32 0, %v555
    %v557 = vrot.slane %v380, %v556
    %v559 = vmul.f32 %v552, %v557
    %v560 = vmul.f32 %v545, %v559
    %v562 = vlaneseq
    %v563 = vshrl.u32 %v562, 7
    %v564 = vsub.s32 0, %v563
    %v565 = vrot.slane %v381, %v564
    %v567 = vadd.f32 %v560, %v565
    %568 = vst.msk [vmem:[#allocation20] sm:$0xff] %vm539, %v567
    // Predicated region
    $region90: #{tpu_custom_call.1} parent=1 // pred_check
      _
    $region91: #{tpu_custom_call.1} parent=1 // pred_check_branch
      %570 = sbr.rel (0) target = $region93
    $region92: #{tpu_custom_call.1} parent=1 // pred_region
      %s572 = ssub.s32 128, 128
      %573 = vsyncadd [#allocation4], %s572
      %s575 = sshll.u32 [#allocation20], 4
      %s576 = int_to_ptr.vmem [resolvable:$true] %s575
      %578 = dma.vmem_to_hbm [thread:$0]  %s576, 128, %s11, [#allocation4]
    $region93: #{tpu_custom_call.1} parent=1 // pred_fallthru
      _
    // Predicated region
    $region94: #{tpu_custom_call.1} parent=1 // pred_check
      _
    $region95: #{tpu_custom_call.1} parent=1 // pred_check_branch
      %580 = sbr.rel (0) target = $region97
    $region96: #{tpu_custom_call.1} parent=1 // pred_region
      %581 = dma.done [#allocation4], 128
    $region97: #{tpu_custom_call.1} parent=1 // pred_fallthru
      _
    %582 = vsyncpa [#allocation3], 1
    %583 = vsyncpa [#allocation6], 1
    %584 = vsyncpa [#allocation9], 1
    %585 = vsyncpa [#allocation12], 1
    %586 = vsyncpa [#allocation15], 1
    %587 = vsyncpa [#allocation18], 1
    %588 = vsyncpa [#allocation4], 1

</llo_original>
